<compile_context>
chip_gen: v5e
topology: v5e:2x2
jax: 0.10.0
libtpu: 0.0.40
codegen_flags: <defaults>
</compile_context>

<pallas_src>
import functools
import numpy as np
import jax
import jax.numpy as jnp
from jax import lax
from jax.experimental import pallas as pl
from jax.experimental.pallas import tpu as pltpu

# 512 sublane-rows x 128 lanes = 65536 bonds per grid step.
# Per-step input bytes: (5 f32 fields + 1 i32 fid) * 65536 * 4 B = 1.5 MiB
# (~3 MiB double-buffered): inside default scoped VMEM on v5e/v6e/v7x and large
# enough to amortize the ~0.35 us fixed per-step pipeline overhead.
DEFAULT_TILE_ROWS = 512


def _harmonic_bond_kernel(tile_fmin_ref, tile_fmax_ref,   # scalar prefetch (SMEM)
                          slab_ref, fid_ref,              # inputs (VMEM tiles)
                          out_ref,                        # output (resident)
                          acc_ref):                       # scratch (B, 128) f32
    t = pl.program_id(0)

    @pl.when(t == 0)
    def _():
        acc_ref[...] = jnp.zeros_like(acc_ref)

    # Packed slab rows: 0:x 1:y 2:z 3:stiffness 4:equilibrium.
    x = slab_ref[0]
    y = slab_ref[1]
    z = slab_ref[2]
    stiff = slab_ref[3]
    eq = slab_ref[4]

    # Padded bonds have x=y=z=stiff=eq=0 -> sqrt(0)=0 and e=0 (forward-safe; a VJP
    # would need an epsilon under the sqrt).
    d = jnp.sqrt(x * x + y * y + z * z)                    # (TR, 128)
    diff = d - eq
    e = stiff * diff * diff                                # (TR, 128) per-bond energy

    # Frame aggregation (scatter_add equivalent).  Bonds are sorted by frame, so
    # this tile only touches frames in [fmin, fmax].  Interior tiles (fmin == fmax)
    # use one unmasked sublane reduce; boundary tiles loop over the frames present.
    fid = fid_ref[...]                                     # (TR, 128) int32
    fmin = tile_fmin_ref[t]
    fmax = tile_fmax_ref[t]
    row_ids = lax.broadcasted_iota(jnp.int32, acc_ref.shape, 0)   # (B, 128)

    @pl.when(fmin == fmax)
    def _():
        contrib = jnp.sum(e, axis=0, keepdims=True)        # (1, 128), unmasked
        acc_ref[...] += jnp.where(row_ids == fmin, contrib, 0.0)

    @pl.when(fmin != fmax)
    def _():
        def body(f, carry):
            contrib = jnp.sum(jnp.where(fid == f, e, 0.0),
                              axis=0, keepdims=True)       # (1, 128)
            acc_ref[...] += jnp.where(row_ids == f, contrib, 0.0)
            return carry
        lax.fori_loop(fmin, fmax + 1, body, 0)

    @pl.when(t == pl.num_programs(0) - 1)
    def _():
        # One-time epilogue: cross-lane (XLU) reduce + *0.5 finalize.
        out_ref[...] = 0.5 * jnp.sum(acc_ref[...], axis=1, keepdims=True)  # (B, 1)


@functools.partial(jax.jit, static_argnames=("batch_size", "tile_rows"))
def harmonic_bond_prior(tile_fmin, tile_fmax, slab, fid2d, *, batch_size,
                        tile_rows=DEFAULT_TILE_ROWS):
    nfields, nr, lanes = slab.shape
    assert lanes == 128 and nr % tile_rows == 0
    num_tiles = nr // tile_rows

    grid_spec = pltpu.PrefetchScalarGridSpec(
        num_scalar_prefetch=2,
        grid=(num_tiles,),
        in_specs=[
            pl.BlockSpec((nfields, tile_rows, 128),
                         lambda t, fmin, fmax: (0, t, 0)),
            pl.BlockSpec((tile_rows, 128),
                         lambda t, fmin, fmax: (t, 0)),
        ],
        out_specs=pl.BlockSpec((batch_size, 1), lambda t, fmin, fmax: (0, 0)),
        scratch_shapes=[pltpu.VMEM((batch_size, 128), jnp.float32)],
    )

    out = pl.pallas_call(
        _harmonic_bond_kernel,
        out_shape=jax.ShapeDtypeStruct((batch_size, 1), jnp.float32),
        grid_spec=grid_spec,
        # Single reduction axis over bond tiles (output is an accumulator across it).
        # TODO(synk): on v7x, shard this axis across the two TensorCores
        # (pltpu.CORE_PARALLEL / pl.core_map) with per-core partial outputs.
        compiler_params=pltpu.CompilerParams(
            dimension_semantics=("arbitrary",)),
    )(tile_fmin, tile_fmax, slab, fid2d)

    return out[:, 0]   # matches torch.squeeze -> [batch_size]


def prepare_inputs(Rij, idx_of_bonds, bond_types, n_bonds,
                   stiffness, equilibrium_value, *, tile_rows=DEFAULT_TILE_ROWS):
    """Glue (plain JAX / numpy): reproduces HarmonicBondPrior.initialize() and the
    frame-index construction from aggregate_by_frame(), producing the packed
    lane+sublane-dense arrays for the kernel plus per-tile frame-range scalars.
    # TODO(synk): fuse the Rij[idx_of_bonds] gather with the pad/reshape into one XLA
    # op (or scalar-prefetch idx_of_bonds and DMA-gather Rij rows inside the kernel)
    # to avoid materializing Rij_bonds in HBM."""
    stiffness = jnp.asarray(stiffness, jnp.float32)
    equilibrium_value = jnp.asarray(equilibrium_value, jnp.float32)
    bond_types = jnp.asarray(bond_types)

    # initialize(): bond_types doubled, then used to index stiffness / equilibrium
    bond_types_doubled = jnp.concatenate([bond_types, bond_types], axis=0)
    stiffness_list = stiffness[bond_types_doubled]
    eq_list = equilibrium_value[bond_types_doubled]

    # forward(): gather of Rij rows (data-dependent gather kept in glue)
    Rij_bonds = jnp.asarray(Rij, jnp.float32)[idx_of_bonds, :]          # (NB, 3)
    nb = Rij_bonds.shape[0]

    # aggregate_by_frame(): frame index per (doubled) bond
    n_bonds_doubled = np.asarray(n_bonds) * 2
    batch_size = len(n_bonds_doubled)
    idx_frame = np.concatenate(
        [np.full((int(n_bonds_doubled[i]),), i, dtype=np.int32)
         for i in range(batch_size)])
    assert idx_frame.shape[0] == nb
    # sorted-by-frame invariant: REQUIRED by the per-tile [fmin, fmax] aggregation
    assert np.all(np.diff(idx_frame) >= 0)

    # Pad bonds so they fill a (nr, 128) grid with nr a multiple of tile_rows
    # (shrinking tile_rows for small problems so we don't pad to 64K bonds).
    rows = -(-nb // 128)
    if rows <= tile_rows:
        tile_rows = max(8, ((rows + 7) // 8) * 8)
    assert tile_rows % 8 == 0
    nr = ((rows + tile_rows - 1) // tile_rows) * tile_rows
    nb_pad = nr * 128
    pad = nb_pad - nb

    def to2d(v):
        return jnp.pad(jnp.asarray(v, jnp.float32), (0, pad)).reshape(nr, 128)

    # Packed slab: [x, y, z, stiffness, equilibrium], each (nr, 128) bond-dense.
    slab = jnp.stack([to2d(Rij_bonds[:, 0]), to2d(Rij_bonds[:, 1]),
                      to2d(Rij_bonds[:, 2]), to2d(stiffness_list),
                      to2d(eq_list)], axis=0)                            # (5, nr, 128)

    # Padded bonds: stiffness 0 -> zero energy; assign them the LAST real frame id so
    # they never widen a tile's [fmin, fmax] range. (int16 fid would shave ~8% HBM
    # bytes; skipped for simplicity of the uniform layout.)
    fid_pad_np = np.concatenate(
        [idx_frame, np.full((pad,), int(idx_frame[-1]), np.int32)]).astype(np.int32)
    fid2d = jnp.asarray(fid_pad_np.reshape(nr, 128))

    num_tiles = nr // tile_rows
    per_tile = fid_pad_np.reshape(num_tiles, tile_rows * 128)
    tile_fmin = jnp.asarray(per_tile.min(axis=1).astype(np.int32))
    tile_fmax = jnp.asarray(per_tile.max(axis=1).astype(np.int32))

    return slab, fid2d, tile_fmin, tile_fmax, batch_size, tile_rows


def reference(Rij, idx_of_bonds, bond_types, n_bonds, stiffness, equilibrium_value):
    """Pure-JAX reference mirroring the PyTorch forward."""
    stiffness = jnp.asarray(stiffness, jnp.float32)
    equilibrium_value = jnp.asarray(equilibrium_value, jnp.float32)
    bt2 = jnp.concatenate([jnp.asarray(bond_types), jnp.asarray(bond_types)], axis=0)
    stiff_list = stiffness[bt2]
    eq_list = equilibrium_value[bt2]
    Rij_bonds = jnp.asarray(Rij, jnp.float32)[idx_of_bonds, :]
    d = jnp.linalg.norm(Rij_bonds, axis=1)
    e_batch = stiff_list * (d - eq_list) ** 2
    n_bonds_doubled = np.asarray(n_bonds) * 2
    batch_size = len(n_bonds_doubled)
    idx_frame = np.concatenate(
        [np.full((int(n_bonds_doubled[i]),), i, dtype=np.int32)
         for i in range(batch_size)])
    E = jnp.zeros((batch_size,), jnp.float32).at[idx_frame].add(e_batch)
    return 0.5 * E


if __name__ == "__main__":
    key = jax.random.PRNGKey(0)
    k1, k2, k3 = jax.random.split(key, 3)

    # small synthetic system: 2 frames, 4 bonds/frame (doubled -> 16 directed bonds)
    batch_size = 2
    n_bonds = [4, 4]                      # per-frame undirected bond count
    n_pairs = 40                          # rows of Rij (neighbor-pair displacement vectors)
    n_bond_types = 3

    Rij = jax.random.normal(k1, (n_pairs, 3), dtype=jnp.float32)
    total_directed_bonds = 2 * sum(n_bonds)
    idx_of_bonds = jax.random.randint(k2, (total_directed_bonds,), 0, n_pairs)
    bond_types = jax.random.randint(k3, (sum(n_bonds),), 0, n_bond_types)

    # deterministic "parameters" (per-bond-type stiffness / equilibrium length)
    stiffness_vals = [10.0, 25.0, 5.0]
    equilibrium_vals = [1.0, 1.5, 0.9]

    slab, fid2d, tile_fmin, tile_fmax, B, tile_rows = prepare_inputs(
        Rij, idx_of_bonds, bond_types, n_bonds, stiffness_vals, equilibrium_vals)

    bond_energy = harmonic_bond_prior(
        tile_fmin, tile_fmax, slab, fid2d, batch_size=B, tile_rows=tile_rows)
    bond_energy = jax.block_until_ready(bond_energy)

    ref = reference(Rij, idx_of_bonds, bond_types, n_bonds,
                    stiffness_vals, equilibrium_vals)
    np.testing.assert_allclose(np.asarray(bond_energy), np.asarray(ref),
                               rtol=1e-5, atol=1e-5)

    print("KERNEL_OK")
</pallas_src>

<mosaic_0001>
module attributes {stable_mosaic.version = 11 : i64} {
  func.func @_harmonic_bond_kernel(%arg0: i32, %arg1: memref<1xi32, #tpu.memory_space<smem>>, %arg2: memref<1xi32, #tpu.memory_space<smem>>, %arg3: memref<5x8x128xf32, #tpu.memory_space<vmem>>, %arg4: memref<8x128xi32, #tpu.memory_space<vmem>>, %arg5: memref<2x1xf32, #tpu.memory_space<vmem>>, %arg6: memref<2x128xf32, #tpu.memory_space<vmem>>) attributes {dimension_semantics = [#tpu.dimension_semantics<arbitrary>], iteration_bounds = array<i64: 1>, scalar_prefetch = 2 : i64, scratch_operands = 1 : i64, tpu.core_type = #tpu.core_type<tc>, window_params = [{transform_indices = @transform_0, window_bounds = array<i64: 5, 8, 128>}, {transform_indices = @transform_1, window_bounds = array<i64: 8, 128>}, {pipeline_mode = #tpu.pipeline_mode<synchronous>, transform_indices = @transform_2, window_bounds = array<i64: 2, 1>}]} {
    %c0_i32 = arith.constant 0 : i32
    %0 = arith.cmpi eq, %arg0, %c0_i32 : i32
    %1 = arith.extui %0 : i1 to i32
    %c0_i32_0 = arith.constant 0 : i32
    %2 = arith.cmpi ne, %1, %c0_i32_0 : i32
    scf.if %2 {
      %cst = arith.constant 0.000000e+00 : f32
      %37 = vector.broadcast %cst : f32 to vector<2x128xf32>
      %c0_17 = arith.constant 0 : index
      %c0_18 = arith.constant 0 : index
      %38 = vector.load %arg6[%c0_17, %c0_18] : memref<2x128xf32, #tpu.memory_space<vmem>>, vector<2x128xf32>
      tpu.vector_store %arg6[%c0_17, %c0_18], %37 {strides = array<i32>} : memref<2x128xf32, #tpu.memory_space<vmem>>, vector<2x128xf32>,
    } else {
    }
    %c0 = arith.constant 0 : index
    %c0_1 = arith.constant 0 : index
    %c0_2 = arith.constant 0 : index
    %3 = vector.load %arg3[%c0, %c0_1, %c0_2] : memref<5x8x128xf32, #tpu.memory_space<vmem>>, vector<1x8x128xf32>
    %4 = vector.shape_cast %3 : vector<1x8x128xf32> to vector<8x128xf32>
    %c1 = arith.constant 1 : index
    %c0_3 = arith.constant 0 : index
    %c0_4 = arith.constant 0 : index
    %5 = vector.load %arg3[%c1, %c0_3, %c0_4] : memref<5x8x128xf32, #tpu.memory_space<vmem>>, vector<1x8x128xf32>
    %6 = vector.shape_cast %5 : vector<1x8x128xf32> to vector<8x128xf32>
    %c2 = arith.constant 2 : index
    %c0_5 = arith.constant 0 : index
    %c0_6 = arith.constant 0 : index
    %7 = vector.load %arg3[%c2, %c0_5, %c0_6] : memref<5x8x128xf32, #tpu.memory_space<vmem>>, vector<1x8x128xf32>
    %8 = vector.shape_cast %7 : vector<1x8x128xf32> to vector<8x128xf32>
    %c3 = arith.constant 3 : index
    %c0_7 = arith.constant 0 : index
    %c0_8 = arith.constant 0 : index
    %9 = vector.load %arg3[%c3, %c0_7, %c0_8] : memref<5x8x128xf32, #tpu.memory_space<vmem>>, vector<1x8x128xf32>
    %10 = vector.shape_cast %9 : vector<1x8x128xf32> to vector<8x128xf32>
    %c4 = arith.constant 4 : index
    %c0_9 = arith.constant 0 : index
    %c0_10 = arith.constant 0 : index
    %11 = vector.load %arg3[%c4, %c0_9, %c0_10] : memref<5x8x128xf32, #tpu.memory_space<vmem>>, vector<1x8x128xf32>
    %12 = vector.shape_cast %11 : vector<1x8x128xf32> to vector<8x128xf32>
    %13 = arith.mulf %4, %4 : vector<8x128xf32>
    %14 = arith.mulf %6, %6 : vector<8x128xf32>
    %15 = arith.addf %13, %14 : vector<8x128xf32>
    %16 = arith.mulf %8, %8 : vector<8x128xf32>
    %17 = arith.addf %15, %16 : vector<8x128xf32>
    %18 = math.sqrt %17 : vector<8x128xf32>
    %19 = arith.subf %18, %12 : vector<8x128xf32>
    %20 = arith.mulf %10, %19 : vector<8x128xf32>
    %21 = arith.mulf %20, %19 : vector<8x128xf32>
    %c0_11 = arith.constant 0 : index
    %c0_12 = arith.constant 0 : index
    %22 = vector.load %arg4[%c0_11, %c0_12] : memref<8x128xi32, #tpu.memory_space<vmem>>, vector<8x128xi32>
    %23 = arith.index_cast %arg0 : i32 to index
    %24 = memref.load %arg1[%23] : memref<1xi32, #tpu.memory_space<smem>>
    %25 = arith.index_cast %arg0 : i32 to index
    %26 = memref.load %arg2[%25] : memref<1xi32, #tpu.memory_space<smem>>
    %27 = tpu.iota {dimensions = array<i32: 0>} : vector<2x128xi32>
    %28 = arith.cmpi eq, %24, %26 : i32
    %29 = arith.extui %28 : i1 to i32
    %c0_i32_13 = arith.constant 0 : i32
    %30 = arith.cmpi ne, %29, %c0_i32_13 : i32
    scf.if %30 {
      %cst = arith.constant dense<0.000000e+00> : vector<128xf32>
      %37 = vector.multi_reduction <add>, %21, %cst [0] : vector<8x128xf32> to vector<128xf32>
      %38 = vector.shape_cast %37 : vector<128xf32> to vector<1x128xf32>
      %c0_17 = arith.constant 0 : index
      %c0_18 = arith.constant 0 : index
      %39 = vector.load %arg6[%c0_17, %c0_18] : memref<2x128xf32, #tpu.memory_space<vmem>>, vector<2x128xf32>
      %40 = vector.broadcast %24 : i32 to vector<2x128xi32>
      %41 = arith.cmpi eq, %27, %40 : vector<2x128xi32>
      %cst_19 = arith.constant 0.000000e+00 : f32
      %42 = vector.shape_cast %38 : vector<1x128xf32> to vector<1x128xf32>
      %43 = vector.broadcast %42 : vector<1x128xf32> to vector<2x128xf32>
      %44 = vector.broadcast %cst_19 : f32 to vector<2x128xf32>
      %45 = arith.select %41, %43, %44 : vector<2x128xi1>, vector<2x128xf32>
      %46 = arith.addf %39, %45 : vector<2x128xf32>
      %c0_20 = arith.constant 0 : index
      %c0_21 = arith.constant 0 : index
      %47 = vector.load %arg6[%c0_20, %c0_21] : memref<2x128xf32, #tpu.memory_space<vmem>>, vector<2x128xf32>
      tpu.vector_store %arg6[%c0_20, %c0_21], %46 {strides = array<i32>} : memref<2x128xf32, #tpu.memory_space<vmem>>, vector<2x128xf32>,
    } else {
    }
    %31 = arith.cmpi ne, %24, %26 : i32
    %32 = arith.extui %31 : i1 to i32
    %c0_i32_14 = arith.constant 0 : i32
    %33 = arith.cmpi ne, %32, %c0_i32_14 : i32
    scf.if %33 {
      %c1_i32 = arith.constant 1 : i32
      %37 = arith.addi %26, %c1_i32 : i32
      %c0_i32_17 = arith.constant 0 : i32
      %38 = arith.subi %37, %24 : i32
      %39 = arith.addi %24, %38 : i32
      %c1_i32_18 = arith.constant 1 : i32
      scf.for %arg7 = %24 to %39 step %c1_i32_18  : i32 {
        %40 = vector.broadcast %arg7 : i32 to vector<8x128xi32>
        %41 = arith.cmpi eq, %22, %40 : vector<8x128xi32>
        %cst = arith.constant 0.000000e+00 : f32
        %42 = vector.broadcast %cst : f32 to vector<8x128xf32>
        %43 = arith.select %41, %21, %42 : vector<8x128xi1>, vector<8x128xf32>
        %cst_19 = arith.constant dense<0.000000e+00> : vector<128xf32>
        %44 = vector.multi_reduction <add>, %43, %cst_19 [0] : vector<8x128xf32> to vector<128xf32>
        %45 = vector.shape_cast %44 : vector<128xf32> to vector<1x128xf32>
        %c0_20 = arith.constant 0 : index
        %c0_21 = arith.constant 0 : index
        %46 = vector.load %arg6[%c0_20, %c0_21] : memref<2x128xf32, #tpu.memory_space<vmem>>, vector<2x128xf32>
        %47 = vector.broadcast %arg7 : i32 to vector<2x128xi32>
        %48 = arith.cmpi eq, %27, %47 : vector<2x128xi32>
        %cst_22 = arith.constant 0.000000e+00 : f32
        %49 = vector.shape_cast %45 : vector<1x128xf32> to vector<1x128xf32>
        %50 = vector.broadcast %49 : vector<1x128xf32> to vector<2x128xf32>
        %51 = vector.broadcast %cst_22 : f32 to vector<2x128xf32>
        %52 = arith.select %48, %50, %51 : vector<2x128xi1>, vector<2x128xf32>
        %53 = arith.addf %46, %52 : vector<2x128xf32>
        %c0_23 = arith.constant 0 : index
        %c0_24 = arith.constant 0 : index
        %54 = vector.load %arg6[%c0_23, %c0_24] : memref<2x128xf32, #tpu.memory_space<vmem>>, vector<2x128xf32>
        tpu.vector_store %arg6[%c0_23, %c0_24], %53 {strides = array<i32>} : memref<2x128xf32, #tpu.memory_space<vmem>>, vector<2x128xf32>,
      }
    } else {
    }
    %c0_i32_15 = arith.constant 0 : i32
    %34 = arith.cmpi eq, %arg0, %c0_i32_15 : i32
    %35 = arith.extui %34 : i1 to i32
    %c0_i32_16 = arith.constant 0 : i32
    %36 = arith.cmpi ne, %35, %c0_i32_16 : i32
    scf.if %36 {
      %c0_17 = arith.constant 0 : index
      %c0_18 = arith.constant 0 : index
      %37 = vector.load %arg6[%c0_17, %c0_18] : memref<2x128xf32, #tpu.memory_space<vmem>>, vector<2x128xf32>
      %cst = arith.constant dense<0.000000e+00> : vector<2xf32>
      %38 = vector.multi_reduction <add>, %37, %cst [1] : vector<2x128xf32> to vector<2xf32>
      %39 = vector.shape_cast %38 : vector<2xf32> to vector<2x1xf32>
      %cst_19 = arith.constant 5.000000e-01 : f32
      %40 = vector.broadcast %cst_19 : f32 to vector<2x1xf32>
      %41 = arith.mulf %40, %39 : vector<2x1xf32>
      %c0_20 = arith.constant 0 : index
      %c0_21 = arith.constant 0 : index
      %42 = vector.load %arg5[%c0_20, %c0_21] : memref<2x1xf32, #tpu.memory_space<vmem>>, vector<2x1xf32>
      tpu.vector_store %arg5[%c0_20, %c0_21], %41 {strides = array<i32>} : memref<2x1xf32, #tpu.memory_space<vmem>>, vector<2x1xf32>,
    } else {
    }
    return
  }
  func.func @transform_0(%arg0: i32, %arg1: memref<1xi32, #tpu.memory_space<smem>>, %arg2: memref<1xi32, #tpu.memory_space<smem>>) -> (i32, i32, i32) {
    %c0_i32 = arith.constant 0 : i32
    %c0_i32_0 = arith.constant 0 : i32
    %c0_i32_1 = arith.constant 0 : i32
    return %c0_i32, %arg0, %c0_i32_0 : i32, i32, i32
  }
  func.func @transform_1(%arg0: i32, %arg1: memref<1xi32, #tpu.memory_space<smem>>, %arg2: memref<1xi32, #tpu.memory_space<smem>>) -> (i32, i32) {
    %c0_i32 = arith.constant 0 : i32
    %c0_i32_0 = arith.constant 0 : i32
    return %arg0, %c0_i32 : i32, i32
  }
  func.func @transform_2(%arg0: i32, %arg1: memref<1xi32, #tpu.memory_space<smem>>, %arg2: memref<1xi32, #tpu.memory_space<smem>>) -> (i32, i32) {
    %c0_i32 = arith.constant 0 : i32
    %c0_i32_0 = arith.constant 0 : i32
    %c0_i32_1 = arith.constant 0 : i32
    return %c0_i32, %c0_i32_0 : i32, i32
  }
}

</mosaic_0001>

<llo_original>
// kernel: harmonic_bond_prior.1
$region0: #{harmonic_bond_prior.1}
  #allocation0 [shape = 'u32[]', space=smem, size = 0x4, offset = 0x4, fixed_abs, tag = 'smem constant byte address 0x4 - core index']
  #allocation1 [shape = 'u32[72,128]{1,0:T(1,128)}', space=vmem, size = 0x9000, scoped, tag = 'internal scratch']
  #allocation2 [shape = 'f32[2,128]{1,0:T(2,128)}', space=vmem, size = 0x400, scoped, tag = 'scratch operand']
  #allocation3 [shape = 's32[1]{0}', space=sflag, size = 0x4, scoped, tag = 'scoped memory for harmonic_bond_prior.1']
  #allocation4 [shape = 's32[1]{0:T(128)S(6)}', space=smem, size = 0x200, scoped, tag = 'prefetched SMEM operand 0']
  #allocation5 [shape = 's32[1]{0:T(128)S(6)}', space=smem, size = 0x200, scoped, tag = 'prefetched SMEM operand 1']
  %s0 = inlined_call_operand.<no memory space> [shape: s32[1], index: 0, kind: input, shape index: {}]
  %s1 = inlined_call_operand.<no memory space> [shape: s32[1], index: 1, kind: input, shape index: {}]
  %s2 = inlined_call_operand.hbm [shape: f32[5,8,128], index: 2, kind: input, shape index: {}]
  %s3 = inlined_call_operand.hbm [shape: s32[8,128], index: 3, kind: input, shape index: {}]
  %s4 = inlined_call_operand.vmem [shape: f32[2,1], index: 4, kind: output, shape index: {}]
  %s5 = sld [smem:[#allocation0]]
  $region49: #{harmonic_bond_prior.1} parent=0
    _
  %s7 = ssub.s32 1, %s5
  %s8 = scalar_select 0, %s7, %s5
  %9 = sst [smem:[#allocation4]] %s0
  %10 = sst [smem:[#allocation5]] %s1
  $region1: #{harmonic_bond_prior.1} parent=0
    #allocation6 [shape = 'u8[20480]{0}', space=vmem, size = 0x5000, scoped, tag = 'input window, operand 2, single buffered']
    #allocation7 [shape = 's32[1]{0}', space=sflag, size = 0x4, scoped, tag = 'scoped memory for harmonic_bond_prior.1']
    #allocation8 [shape = 'u8[4096]{0}', space=vmem, size = 0x1000, scoped, tag = 'input window, operand 3, single buffered']
    #allocation9 [shape = 's32[1]{0}', space=sflag, size = 0x4, scoped, tag = 'scoped memory for harmonic_bond_prior.1']
    %11 = vsyncpa [#allocation7], 0
    %12 = vsyncpa [#allocation9], 0
    // Predicated region
    $region2: #{harmonic_bond_prior.1} parent=1 // pred_check
      _
    $region3: #{harmonic_bond_prior.1} parent=1 // pred_check_branch
      %14 = sbr.rel (0) target = $region5
    $region4: #{harmonic_bond_prior.1} parent=1 // pred_region
      %16 = vsyncadd [#allocation7], 0
      %s17 = sshll.u32 %s2, 4
      %s18 = int_to_ptr.hbm [resolvable:$true] %s17
      %s19 = sshll.u32 [#allocation6], 4
      %s20 = int_to_ptr.vmem [resolvable:$true] %s19
      %25 = dma.hbm_to_vmem [thread:$0]  %s18, 640, %s20, [#allocation7], 128, 128, 8
    $region5: #{harmonic_bond_prior.1} parent=1 // pred_fallthru
      _
    // Predicated region
    $region6: #{harmonic_bond_prior.1} parent=1 // pred_check
      _
    $region7: #{harmonic_bond_prior.1} parent=1 // pred_check_branch
      %27 = sbr.rel (0) target = $region9
    $region8: #{harmonic_bond_prior.1} parent=1 // pred_region
      %29 = vsyncadd [#allocation9], 0
      %s31 = sshll.u32 %s3, 4
      %s32 = int_to_ptr.hbm [resolvable:$true] %s31
      %s33 = sshll.u32 [#allocation8], 4
      %s34 = int_to_ptr.vmem [resolvable:$true] %s33
      %36 = dma.hbm_to_vmem [thread:$0]  %s32, 128, %s34, [#allocation9]
    $region9: #{harmonic_bond_prior.1} parent=1 // pred_fallthru
      _
    // Predicated region
    $region10: #{harmonic_bond_prior.1} parent=1 // pred_check
      _
    $region11: #{harmonic_bond_prior.1} parent=1 // pred_check_branch
      %38 = sbr.rel (0) target = $region13
    $region12: #{harmonic_bond_prior.1} parent=1 // pred_region
      %40 = dma.done [#allocation7], 640
    $region13: #{harmonic_bond_prior.1} parent=1 // pred_fallthru
      _
    // Predicated region
    $region14: #{harmonic_bond_prior.1} parent=1 // pred_check
      _
    $region15: #{harmonic_bond_prior.1} parent=1 // pred_check_branch
      %42 = sbr.rel (0) target = $region17
    $region16: #{harmonic_bond_prior.1} parent=1 // pred_region
      %44 = dma.done [#allocation9], 128
    $region17: #{harmonic_bond_prior.1} parent=1 // pred_fallthru
      _
    %p45 = scmp.eq.s32.totalorder 0, 0
    // Predicated region
    $region18: #{harmonic_bond_prior.1} parent=1 // pred_check
      %p46 = pneg %p45
    $region19: #{harmonic_bond_prior.1} parent=1 // pred_check_branch
      %48 = sbr.rel (%p46) target = $region21
    $region20: #{harmonic_bond_prior.1} parent=1 // pred_region
      %49 = vst [vmem:[#allocation2] sm:$0x3] 0.0
    $region21: #{harmonic_bond_prior.1} parent=1 // pred_fallthru
      _
    %v50 = vld [vmem:[#allocation6] sm:$0xff]
    %s51 = scalar_lea.vmem [#allocation6], 8
    %v52 = vld [vmem:[%s51] sm:$0xff]
    %s53 = scalar_lea.vmem [#allocation6], 16
    %v54 = vld [vmem:[%s53] sm:$0xff]
    %s55 = scalar_lea.vmem [#allocation6], 24
    %v56 = vld [vmem:[%s55] sm:$0xff]
    %s57 = scalar_lea.vmem [#allocation6], 32
    %v58 = vld [vmem:[%s57] sm:$0xff]
    %v59 = vmul.f32 %v50, %v50
    %v60 = vmul.f32 %v52, %v52
    %v61 = vadd.f32 %v59, %v60
    %v62 = vmul.f32 %v54, %v54
    %v63 = vadd.f32 %v61, %v62
    %v64 = vrsqrt.pop %v63
    %v65 = vmul.f32 %v64, %v63
    %v66 = vmul.f32 %v65, %v64
    %v67 = vmul.f32 0.5, %v66
    %v68 = vsub.f32 1.5, %v67
    %v69 = vmul.f32 %v64, %v68
    %v70 = vmul.f32 %v63, %v69
    %vm71 = vcmp.eq.f32.partialorder %v63, inf
    %v72 = vsel %vm71, %v63, %v70
    %vm73 = vcmp.eq.f32.partialorder %v63, 0.0
    %v74 = vand.u32 %v63, 2147483648
    %v75 = vsel %vm73, %v74, %v72
    %v76 = vsub.f32 %v75, %v58
    %v77 = vmul.f32 %v56, %v76
    %v78 = vmul.f32 %v77, %v76
    %v79 = vld [vmem:[#allocation8] sm:$0xff]
    %s80 = sld [smem:[#allocation4]]
    %s81 = sld [smem:[#allocation5]]
    %v82 = vlaneseq
    %v83 = vshrl.u32 %v82, 7
    %p84 = scmp.eq.s32.totalorder %s80, %s81
    // Predicated region
    $region22: #{harmonic_bond_prior.1} parent=1 // pred_check
      %p85 = pneg %p84
    $region23: #{harmonic_bond_prior.1} parent=1 // pred_check_branch
      %87 = sbr.rel (%p85) target = $region25
    $region24: #{harmonic_bond_prior.1} parent=1 // pred_region
      %v88 = vrot.slane %v78, 4
      %v89 = vadd.f32 %v78, %v88
      %v90 = vrot.slane %v89, 2
      %v91 = vadd.f32 %v89, %v90
      %v92 = vrot.slane %v91, 1
      %v93 = vadd.f32 %v91, %v92
      %v94 = vld [vmem:[#allocation2] sm:$0x3]
      %v95 = vstv %s80
      %vm96 = vcmp.eq.s32.totalorder %v83, %v95
      %v97 = vsel %vm96, %v93, 0.0
      %v98 = vadd.f32 %v94, %v97
      %99 = vst [vmem:[#allocation2] sm:$0x3] %v98
    $region25: #{harmonic_bond_prior.1} parent=1 // pred_fallthru
      _
    %p100 = scmp.ne.s32.totalorder %s80, %s81
    // Predicated region
    $region26: #{harmonic_bond_prior.1} parent=1 // pred_check
      %p101 = pneg %p100
    $region27: #{harmonic_bond_prior.1} parent=1 // pred_check_branch
      %103 = sbr.rel (%p101) target = $region29
    $region28: #{harmonic_bond_prior.1} parent=1 // pred_region
      %s104 = sadd.s32 %s81, 1
      // While loop
      $region30: #{harmonic_bond_prior.1} parent=28 // loop_pre_header
        _
      $region31: #{harmonic_bond_prior.1} parent=28 // loop_header
        %s106 = sphi %s80, %s108
        %p107 = scmp.ge.s32.totalorder %s106, %s104
      $region32: #{harmonic_bond_prior.1} parent=28 // loop_header_branch
        %110 = sbr.rel (%p107) target = $region36
      $region33: #{harmonic_bond_prior.1} parent=28 // loop_body
        %v111 = vstv %s106
        %vm112 = vcmp.eq.s32.totalorder %v79, %v111
        %v113 = vsel %vm112, %v78, 0.0
        %v114 = vrot.slane %v113, 4
        %v115 = vadd.f32 %v113, %v114
        %v116 = vrot.slane %v115, 2
        %v117 = vadd.f32 %v115, %v116
        %v118 = vrot.slane %v117, 1
        %v119 = vadd.f32 %v117, %v118
        %v120 = vld [vmem:[#allocation2] sm:$0x3]
        %vm121 = vcmp.eq.s32.totalorder %v83, %v111
        %v122 = vsel %vm121, %v119, 0.0
        %v123 = vadd.f32 %v120, %v122
        %124 = vst [vmem:[#allocation2] sm:$0x3] %v123
      $region34: #{harmonic_bond_prior.1} parent=28 // loop_footer
        %s108 = sadd.s32 %s106, 1
      $region35: #{harmonic_bond_prior.1} parent=28 // loop_footer_branch
        %105 = sbr.rel target = $region31
      $region36: #{harmonic_bond_prior.1} parent=28 // loop_exit
        _
    $region29: #{harmonic_bond_prior.1} parent=1 // pred_fallthru
      _
    // Predicated region
    $region37: #{harmonic_bond_prior.1} parent=1 // pred_check
      %p125 = pneg %p45
    $region38: #{harmonic_bond_prior.1} parent=1 // pred_check_branch
      %127 = sbr.rel (%p125) target = $region40
    $region39: #{harmonic_bond_prior.1} parent=1 // pred_region
      %v128 = vld [vmem:[#allocation2] sm:$0x3]
      %vm129 = vcmask 1041408
      %v130 = vsel %vm129, %v128, 0.0
      %131 = vadd.xlane.f32.xlu0 %v130
      %v132 = vpop.xlane.xlu0 %131
      %v133 = vmul.f32 %v132, 0.5
      %vm134 = vcmask 1024
      %135 = vst.msk [vmem:[%s4] sm:$0x3] %vm134, %v133
    $region40: #{harmonic_bond_prior.1} parent=1 // pred_fallthru
      _
    // Predicated region
    $region41: #{harmonic_bond_prior.1} parent=1 // pred_check
      _
    $region42: #{harmonic_bond_prior.1} parent=1 // pred_check_branch
      %137 = sbr.rel (0) target = $region44
    $region43: #{harmonic_bond_prior.1} parent=1 // pred_region
      _
    $region44: #{harmonic_bond_prior.1} parent=1 // pred_fallthru
      _
    // Predicated region
    $region45: #{harmonic_bond_prior.1} parent=1 // pred_check
      _
    $region46: #{harmonic_bond_prior.1} parent=1 // pred_check_branch
      %139 = sbr.rel (0) target = $region48
    $region47: #{harmonic_bond_prior.1} parent=1 // pred_region
      _
    $region48: #{harmonic_bond_prior.1} parent=1 // pred_fallthru
      _
    %140 = vsyncpa [#allocation7], 1
    %141 = vsyncpa [#allocation9], 1

</llo_original>
